<compile_context>
chip_gen: v6e
topology: v6e:2x2x1
jax: 0.10.0
libtpu: 0.0.40
codegen_flags: <defaults>
</compile_context>

<pallas_src>
import functools

import jax
import jax.numpy as jnp
from jax.experimental import pallas as pl
from jax.experimental.pallas import tpu as pltpu


# ---------------------------------------------------------------------------
# Kernel: all S steps of the 3-layer MLP in one invocation.
#   g_ref (B, 6d)   h_ref (B*S, d)  rows ordered (batch-major, step-minor)
#   w1g (6d, 2d)  w1h (d, 2d)  b1 (1, 2d)   w2 (2d, d)  b2 (1, d)
#   w3 (d, 2)  b3 (1, 2)
#   logits_ref (B*S, 2) f32
# ---------------------------------------------------------------------------
def _actor_mlp_kernel(B, S, g_ref, h_ref, w1g_ref, w1h_ref, b1_ref,
                      w2_ref, b2_ref, w3_ref, b3_ref, logits_ref):
    xg = g_ref[...]                       # (B, 6d)
    xh = h_ref[...]                       # (B*S, d)
    d2 = w1g_ref.shape[1]                 # 2d

    # Step-invariant half of Linear(7d -> 2d): computed ONCE for all S steps.
    h1g = jnp.dot(xg, w1g_ref[...], preferred_element_type=jnp.float32)
    h1g = h1g + b1_ref[...]                                            # (B, 2d)

    # Step-dependent half, batched over all B*S rows in one MXU pass.
    h1h = jnp.dot(xh, w1h_ref[...], preferred_element_type=jnp.float32)  # (B*S, 2d)

    # Broadcast the small (B, 2d) invariant part across the S steps of each row.
    h1g_full = jnp.broadcast_to(h1g[:, None, :], (B, S, d2)).reshape(B * S, d2)
    h1 = jnp.maximum(h1h + h1g_full, 0.0)                              # (B*S, 2d)

    h2 = jnp.dot(h1, w2_ref[...], preferred_element_type=jnp.float32) + b2_ref[...]
    h2 = jnp.maximum(h2, 0.0)                                          # (B*S, d)

    logits = jnp.dot(h2, w3_ref[...], preferred_element_type=jnp.float32)
    logits_ref[...] = logits + b3_ref[...]                             # (B*S, 2)


def _cost_estimate(B, d, steps):
    flops = (2 * B * 6 * d * 2 * d                       # hoisted g_state matmul (once)
             + 2 * B * steps * (d * 2 * d + 2 * d * d + d * 2))
    w_bytes = 4 * (6 * d * 2 * d + d * 2 * d + 2 * d + 2 * d * d + d + 2 * d + 2)
    io_bytes = 4 * (B * 6 * d + steps * B * d + steps * B * 2)
    return pl.CostEstimate(flops=flops, transcendentals=0,
                           bytes_accessed=w_bytes + io_bytes)


# ---------------------------------------------------------------------------
# Grid-less pallas_call: everything resident in VMEM, one output writeback.
# ---------------------------------------------------------------------------
def _actor_logits_call(params, g_state, hist_flat, n_steps):
    w1g, w1h, b1, w2, b2, w3, b3 = params
    BS, d = hist_flat.shape
    B = BS // n_steps
    vmem = pl.BlockSpec(memory_space=pltpu.MemorySpace.VMEM)
    return pl.pallas_call(
        functools.partial(_actor_mlp_kernel, B, n_steps),
        out_shape=jax.ShapeDtypeStruct((BS, 2), jnp.float32),
        in_specs=[vmem] * 9,
        out_specs=vmem,
        cost_estimate=_cost_estimate(B, d, n_steps),
    )(g_state, hist_flat, w1g, w1h, b1, w2, b2, w3, b3)


# ---------------------------------------------------------------------------
# Parameter init (deterministic, PyTorch nn.Linear-style uniform bounds).
# W1 is generated as the full (7d, 2d) matrix and split into the 6d-row
# (g_state) and d-row (history) halves consumed by the kernel.
# ---------------------------------------------------------------------------
def init_mlp_actor_params(key, d_embed):
    dims = [(7 * d_embed, 2 * d_embed), (2 * d_embed, d_embed), (d_embed, 2)]
    raw = []
    for (fan_in, fan_out) in dims:
        key, kw, kb = jax.random.split(key, 3)
        bound = 1.0 / jnp.sqrt(fan_in)
        w = jax.random.uniform(kw, (fan_in, fan_out), jnp.float32, -bound, bound)
        b = jax.random.uniform(kb, (1, fan_out), jnp.float32, -bound, bound)
        raw.append((w, b))
    (w1, b1), (w2, b2), (w3, b3) = raw
    w1g, w1h = w1[:6 * d_embed], w1[6 * d_embed:]
    return (w1g, w1h, b1, w2, b2, w3, b3)


# ---------------------------------------------------------------------------
# MLPActor.forward (functional: buffers passed & returned explicitly)
# ---------------------------------------------------------------------------
def mlp_actor_forward(params, g_state, history, step, selected_data,
                      unselected_data, *, is_training, is_target, rng_key=None):
    """Single-step forward matching MLPActor.forward.

    Returns (state, batch_action_onehot, b_action, selected_data, unselected_data).
    """
    hist_step = history[:, step]                                   # (B, d)
    logits = _actor_logits_call(params, g_state, hist_step, 1)     # (B, 2)

    # state = torch.cat([g_state, history[:, step]], -1): pure data plumbing,
    # built by XLA in the wrapper (no redundant kernel writeback).
    state = jnp.concatenate([g_state, hist_step], axis=-1)         # (B, 7d)

    if is_training:
        # Categorical(softmax(logits)).sample() == categorical over logits.
        actions = jax.random.categorical(rng_key, logits, axis=-1).astype(jnp.int32)
    else:
        # torch.max tie-break (first max index) == jnp.argmax behavior.
        actions = jnp.argmax(logits, axis=-1).astype(jnp.int32)
    batch_action = jax.nn.one_hot(actions, 2, dtype=jnp.float32)   # scatter_ one-hot
    b_action = actions[:, None]                                    # (B, 1)

    if not is_target:
        sel = actions.astype(jnp.float32)
        selected_data = selected_data.at[:, step].set(sel)
        unselected_data = unselected_data.at[:, step].set(1.0 - sel)

    return state, batch_action, b_action, selected_data, unselected_data


@jax.jit
def mlp_actor_rollout(params, g_state, history):
    """Greedy (inference, is_target=False) forward for ALL steps using ONE
    grid-less pallas_call. Equivalent to looping mlp_actor_forward over
    step=0..H-1 with fixed g_state/history and zero-initialized buffers."""
    B, H, d = history.shape
    hist_flat = history.reshape(B * H, d)                          # free row-major view
    logits = _actor_logits_call(params, g_state, hist_flat, H).reshape(B, H, 2)

    actions = jnp.argmax(logits, axis=-1).astype(jnp.int32)        # (B, H)
    actions_t = actions.T                                          # (H, B)
    states = jnp.concatenate(
        [jnp.broadcast_to(g_state[None], (H, B, g_state.shape[-1])),
         jnp.transpose(history, (1, 0, 2))], axis=-1)              # (H, B, 7d)
    batch_actions = jax.nn.one_hot(actions_t, 2, dtype=jnp.float32)  # (H, B, 2)
    b_actions = actions_t[..., None]                                 # (H, B, 1)
    sel = actions.astype(jnp.float32)                                # (B, H)
    return states, batch_actions, b_actions, sel, 1.0 - sel


# ---------------------------------------------------------------------------
# Pure-JAX reference for the kernel math (correctness check)
# ---------------------------------------------------------------------------
def _mlp_ref(g_state, hist_step, params):
    w1g, w1h, b1, w2, b2, w3, b3 = params
    state = jnp.concatenate([g_state, hist_step], axis=-1)
    w1 = jnp.concatenate([w1g, w1h], axis=0)
    h1 = jax.nn.relu(state @ w1 + b1)
    h2 = jax.nn.relu(h1 @ w2 + b2)
    logits = h2 @ w3 + b3
    return state, logits, jax.nn.softmax(logits, axis=-1)


if __name__ == "__main__":
    B = 8            # batch_size
    H = 8            # history_num
    D = 32           # d_embed
    step = 3

    root = jax.random.PRNGKey(0)
    k_param, k_g, k_h = jax.random.split(root, 3)

    params = init_mlp_actor_params(k_param, D)
    g_state = jax.random.normal(k_g, (B, 6 * D), jnp.float32)    # (8, 192)
    history = jax.random.normal(k_h, (B, H, D), jnp.float32)     # (8, 8, 32)
    selected = jnp.zeros((B, H), jnp.float32)
    unselected = jnp.zeros((B, H), jnp.float32)

    # --- module-faithful single-step forward (inference path) ----------------
    state, action_oh, b_action, sel, unsel = mlp_actor_forward(
        params, g_state, history, step, selected, unselected,
        is_training=False, is_target=False)
    jax.block_until_ready((state, action_oh, b_action, sel, unsel))

    # kernel vs pure-JAX reference
    state_ref, logits_ref, probs_ref = _mlp_ref(g_state, history[:, step], params)
    logits_k = _actor_logits_call(params, g_state, history[:, step], 1)
    jax.block_until_ready(logits_k)
    assert jnp.allclose(logits_k, logits_ref, atol=1e-4, rtol=1e-4)
    assert jnp.allclose(state, state_ref, atol=1e-6, rtol=1e-6)
    assert bool(jnp.all(b_action[:, 0] == jnp.argmax(probs_ref, axis=1)))
    assert state.shape == (B, 7 * D)
    assert action_oh.shape == (B, 2)
    assert b_action.shape == (B, 1)

    # --- fused rollout (one grid-less pallas_call for all H steps) -----------
    states_r, oh_r, bact_r, sel_r, unsel_r = mlp_actor_rollout(params, g_state, history)
    jax.block_until_ready((states_r, oh_r, bact_r, sel_r, unsel_r))

    # reference: per-step loop of the module-faithful forward
    sel_loop = jnp.zeros((B, H), jnp.float32)
    unsel_loop = jnp.zeros((B, H), jnp.float32)
    for s in range(H):
        st, a_oh, ba, sel_loop, unsel_loop = mlp_actor_forward(
            params, g_state, history, s, sel_loop, unsel_loop,
            is_training=False, is_target=False)
        assert jnp.allclose(states_r[s], st, atol=1e-5, rtol=1e-5)
        assert bool(jnp.all(bact_r[s] == ba))
        assert jnp.allclose(oh_r[s], a_oh)
    assert jnp.allclose(sel_r, sel_loop)
    assert jnp.allclose(unsel_r, unsel_loop)

    # training path smoke-test (Categorical sampling from kernel logits)
    _ = mlp_actor_forward(params, g_state, history, step, selected, unselected,
                          is_training=True, is_target=True,
                          rng_key=jax.random.PRNGKey(1))
    jax.block_until_ready(_)

    print("KERNEL_OK")
</pallas_src>

<mosaic_0001>
module attributes {stable_mosaic.version = 11 : i64} {
  func.func @_actor_mlp_kernel(%arg0: memref<8x192xf32, #tpu.memory_space<vmem>>, %arg1: memref<8x32xf32, #tpu.memory_space<vmem>>, %arg2: memref<192x64xf32, #tpu.memory_space<vmem>>, %arg3: memref<32x64xf32, #tpu.memory_space<vmem>>, %arg4: memref<1x64xf32, #tpu.memory_space<vmem>>, %arg5: memref<64x32xf32, #tpu.memory_space<vmem>>, %arg6: memref<1x32xf32, #tpu.memory_space<vmem>>, %arg7: memref<32x2xf32, #tpu.memory_space<vmem>>, %arg8: memref<1x2xf32, #tpu.memory_space<vmem>>, %arg9: memref<8x2xf32, #tpu.memory_space<vmem>>) attributes {dimension_semantics = [], scalar_prefetch = 0 : i64, scratch_operands = 0 : i64, tpu.core_type = #tpu.core_type<tc>} {
    %c0 = arith.constant 0 : index
    %c0_0 = arith.constant 0 : index
    %0 = vector.load %arg0[%c0, %c0_0] : memref<8x192xf32, #tpu.memory_space<vmem>>, vector<8x192xf32>
    %c0_1 = arith.constant 0 : index
    %c0_2 = arith.constant 0 : index
    %1 = vector.load %arg1[%c0_1, %c0_2] : memref<8x32xf32, #tpu.memory_space<vmem>>, vector<8x32xf32>
    %c0_3 = arith.constant 0 : index
    %c0_4 = arith.constant 0 : index
    %2 = vector.load %arg2[%c0_3, %c0_4] : memref<192x64xf32, #tpu.memory_space<vmem>>, vector<192x64xf32>
    %cst = arith.constant dense<0.000000e+00> : vector<8x64xf32>
    %3 = tpu.matmul %0, %2, %cst {dimension_numbers = #tpu.dot_dimension_numbers<[1], [0], [0], [1], [0, 0, 1, 1], [], []>} : vector<8x192xf32>, vector<192x64xf32>, vector<8x64xf32> -> vector<8x64xf32>
    %c0_5 = arith.constant 0 : index
    %c0_6 = arith.constant 0 : index
    %4 = vector.load %arg4[%c0_5, %c0_6] : memref<1x64xf32, #tpu.memory_space<vmem>>, vector<1x64xf32>
    %5 = vector.broadcast %4 : vector<1x64xf32> to vector<8x64xf32>
    %6 = arith.addf %3, %5 : vector<8x64xf32>
    %c0_7 = arith.constant 0 : index
    %c0_8 = arith.constant 0 : index
    %7 = vector.load %arg3[%c0_7, %c0_8] : memref<32x64xf32, #tpu.memory_space<vmem>>, vector<32x64xf32>
    %cst_9 = arith.constant dense<0.000000e+00> : vector<8x64xf32>
    %8 = tpu.matmul %1, %7, %cst_9 {dimension_numbers = #tpu.dot_dimension_numbers<[1], [0], [0], [1], [0, 0, 1, 1], [], []>} : vector<8x32xf32>, vector<32x64xf32>, vector<8x64xf32> -> vector<8x64xf32>
    %9 = vector.shape_cast %6 : vector<8x64xf32> to vector<8x1x64xf32>
    %10 = vector.shape_cast %9 : vector<8x1x64xf32> to vector<8x64xf32>
    %11 = arith.addf %8, %10 : vector<8x64xf32>
    %cst_10 = arith.constant 0.000000e+00 : f32
    %12 = vector.broadcast %cst_10 : f32 to vector<8x64xf32>
    %13 = arith.maximumf %11, %12 : vector<8x64xf32>
    %c0_11 = arith.constant 0 : index
    %c0_12 = arith.constant 0 : index
    %14 = vector.load %arg5[%c0_11, %c0_12] : memref<64x32xf32, #tpu.memory_space<vmem>>, vector<64x32xf32>
    %cst_13 = arith.constant dense<0.000000e+00> : vector<8x32xf32>
    %15 = tpu.matmul %13, %14, %cst_13 {dimension_numbers = #tpu.dot_dimension_numbers<[1], [0], [0], [1], [0, 0, 1, 1], [], []>} : vector<8x64xf32>, vector<64x32xf32>, vector<8x32xf32> -> vector<8x32xf32>
    %c0_14 = arith.constant 0 : index
    %c0_15 = arith.constant 0 : index
    %16 = vector.load %arg6[%c0_14, %c0_15] : memref<1x32xf32, #tpu.memory_space<vmem>>, vector<1x32xf32>
    %17 = vector.broadcast %16 : vector<1x32xf32> to vector<8x32xf32>
    %18 = arith.addf %15, %17 : vector<8x32xf32>
    %cst_16 = arith.constant 0.000000e+00 : f32
    %19 = vector.broadcast %cst_16 : f32 to vector<8x32xf32>
    %20 = arith.maximumf %18, %19 : vector<8x32xf32>
    %c0_17 = arith.constant 0 : index
    %c0_18 = arith.constant 0 : index
    %21 = vector.load %arg7[%c0_17, %c0_18] : memref<32x2xf32, #tpu.memory_space<vmem>>, vector<32x2xf32>
    %cst_19 = arith.constant dense<0.000000e+00> : vector<8x2xf32>
    %22 = tpu.matmul %20, %21, %cst_19 {dimension_numbers = #tpu.dot_dimension_numbers<[1], [0], [0], [1], [0, 0, 1, 1], [], []>} : vector<8x32xf32>, vector<32x2xf32>, vector<8x2xf32> -> vector<8x2xf32>
    %c0_20 = arith.constant 0 : index
    %c0_21 = arith.constant 0 : index
    %23 = vector.load %arg8[%c0_20, %c0_21] : memref<1x2xf32, #tpu.memory_space<vmem>>, vector<1x2xf32>
    %24 = vector.broadcast %23 : vector<1x2xf32> to vector<8x2xf32>
    %25 = arith.addf %22, %24 : vector<8x2xf32>
    %c0_22 = arith.constant 0 : index
    %c0_23 = arith.constant 0 : index
    %26 = vector.load %arg9[%c0_22, %c0_23] : memref<8x2xf32, #tpu.memory_space<vmem>>, vector<8x2xf32>
    tpu.vector_store %arg9[%c0_22, %c0_23], %25 {strides = array<i32>} : memref<8x2xf32, #tpu.memory_space<vmem>>, vector<8x2xf32>,
    return
  }
}

</mosaic_0001>

<llo_original>
// kernel: tpu_custom_call.1
$region0: #{tpu_custom_call.1}
  #allocation0 [shape = 'u32[]', space=smem, size = 0x4, offset = 0x4, fixed_abs, tag = 'smem constant byte address 0x4 - core index']
  #allocation1 [shape = 'u32[144,128]{1,0:T(1,128)}', space=vmem, size = 0x12000, scoped, tag = 'internal scratch']
  %s0 = inlined_call_operand.vmem [shape: f32[8,192], index: 0, kind: input, shape index: {}]
  %s1 = inlined_call_operand.vmem [shape: f32[8,32], index: 1, kind: input, shape index: {}]
  %s2 = inlined_call_operand.vmem [shape: f32[192,64], index: 2, kind: input, shape index: {}]
  %s3 = inlined_call_operand.vmem [shape: f32[32,64], index: 3, kind: input, shape index: {}]
  %s4 = inlined_call_operand.vmem [shape: f32[1,64], index: 4, kind: input, shape index: {}]
  %s5 = inlined_call_operand.vmem [shape: f32[64,32], index: 5, kind: input, shape index: {}]
  %s6 = inlined_call_operand.vmem [shape: f32[1,32], index: 6, kind: input, shape index: {}]
  %s7 = inlined_call_operand.vmem [shape: f32[32,2], index: 7, kind: input, shape index: {}]
  %s8 = inlined_call_operand.vmem [shape: f32[1,2], index: 8, kind: input, shape index: {}]
  %s9 = inlined_call_operand.vmem [shape: f32[8,2], index: 9, kind: output, shape index: {}]
  %s10 = sld [smem:[#allocation0]]
  $region46: #{tpu_custom_call.1} parent=0
    _
  %s12 = ssub.s32 1, %s10
  %s13 = scalar_select 0, %s12, %s10
  // Predicated region
  $region2: #{tpu_custom_call.1} parent=0 // pred_check
    _
  $region3: #{tpu_custom_call.1} parent=0 // pred_check_branch
    %15 = sbr.rel (0) target = $region5
  $region4: #{tpu_custom_call.1} parent=0 // pred_region
    _
  $region5: #{tpu_custom_call.1} parent=0 // pred_fallthru
    _
  // Predicated region
  $region6: #{tpu_custom_call.1} parent=0 // pred_check
    _
  $region7: #{tpu_custom_call.1} parent=0 // pred_check_branch
    %17 = sbr.rel (0) target = $region9
  $region8: #{tpu_custom_call.1} parent=0 // pred_region
    _
  $region9: #{tpu_custom_call.1} parent=0 // pred_fallthru
    _
  // Predicated region
  $region10: #{tpu_custom_call.1} parent=0 // pred_check
    _
  $region11: #{tpu_custom_call.1} parent=0 // pred_check_branch
    %19 = sbr.rel (0) target = $region13
  $region12: #{tpu_custom_call.1} parent=0 // pred_region
    _
  $region13: #{tpu_custom_call.1} parent=0 // pred_fallthru
    _
  // Predicated region
  $region14: #{tpu_custom_call.1} parent=0 // pred_check
    _
  $region15: #{tpu_custom_call.1} parent=0 // pred_check_branch
    %21 = sbr.rel (0) target = $region17
  $region16: #{tpu_custom_call.1} parent=0 // pred_region
    _
  $region17: #{tpu_custom_call.1} parent=0 // pred_fallthru
    _
  // Predicated region
  $region18: #{tpu_custom_call.1} parent=0 // pred_check
    _
  $region19: #{tpu_custom_call.1} parent=0 // pred_check_branch
    %23 = sbr.rel (0) target = $region21
  $region20: #{tpu_custom_call.1} parent=0 // pred_region
    _
  $region21: #{tpu_custom_call.1} parent=0 // pred_fallthru
    _
  // Predicated region
  $region22: #{tpu_custom_call.1} parent=0 // pred_check
    _
  $region23: #{tpu_custom_call.1} parent=0 // pred_check_branch
    %25 = sbr.rel (0) target = $region25
  $region24: #{tpu_custom_call.1} parent=0 // pred_region
    _
  $region25: #{tpu_custom_call.1} parent=0 // pred_fallthru
    _
  // Predicated region
  $region26: #{tpu_custom_call.1} parent=0 // pred_check
    _
  $region27: #{tpu_custom_call.1} parent=0 // pred_check_branch
    %27 = sbr.rel (0) target = $region29
  $region28: #{tpu_custom_call.1} parent=0 // pred_region
    _
  $region29: #{tpu_custom_call.1} parent=0 // pred_fallthru
    _
  // Predicated region
  $region30: #{tpu_custom_call.1} parent=0 // pred_check
    _
  $region31: #{tpu_custom_call.1} parent=0 // pred_check_branch
    %29 = sbr.rel (0) target = $region33
  $region32: #{tpu_custom_call.1} parent=0 // pred_region
    _
  $region33: #{tpu_custom_call.1} parent=0 // pred_fallthru
    _
  // Predicated region
  $region34: #{tpu_custom_call.1} parent=0 // pred_check
    _
  $region35: #{tpu_custom_call.1} parent=0 // pred_check_branch
    %31 = sbr.rel (0) target = $region37
  $region36: #{tpu_custom_call.1} parent=0 // pred_region
    _
  $region37: #{tpu_custom_call.1} parent=0 // pred_fallthru
    _
  %v32 = vld [vmem:[%s0] sm:$0xff]
  %v33 = vld [vmem:[%s0 + $0x8] sm:$0xff]
  %v34 = vld [vmem:[%s1] sm:$0xff]
  %v35 = vld [vmem:[%s2] sm:$0xff]
  %v36 = vld [vmem:[%s2 + $0x8] sm:$0xff]
  %v37 = vld [vmem:[%s2 + $0x10] sm:$0xff]
  %v38 = vld [vmem:[%s2 + $0x18] sm:$0xff]
  %v39 = vld [vmem:[%s2 + $0x20] sm:$0xff]
  %v40 = vld [vmem:[%s2 + $0x28] sm:$0xff]
  %v41 = vld [vmem:[%s2 + $0x30] sm:$0xff]
  %v42 = vld [vmem:[%s2 + $0x38] sm:$0xff]
  %v43 = vld [vmem:[%s2 + $0x40] sm:$0xff]
  %v44 = vld [vmem:[%s2 + $0x48] sm:$0xff]
  %v45 = vld [vmem:[%s2 + $0x50] sm:$0xff]
  %v46 = vld [vmem:[%s2 + $0x58] sm:$0xff]
  %v47 = vld [vmem:[%s2 + $0x60] sm:$0xff]
  %v48 = vld [vmem:[%s2 + $0x68] sm:$0xff]
  %v49 = vld [vmem:[%s2 + $0x70] sm:$0xff]
  %v50 = vld [vmem:[%s2 + $0x78] sm:$0xff]
  %v51 = vld [vmem:[%s2 + $0x80] sm:$0xff]
  %v52 = vld [vmem:[%s2 + $0x88] sm:$0xff]
  %v53 = vld [vmem:[%s2 + $0x90] sm:$0xff]
  %v54 = vld [vmem:[%s2 + $0x98] sm:$0xff]
  %v55 = vld [vmem:[%s2 + $0xa0] sm:$0xff]
  %v56 = vld [vmem:[%s2 + $0xa8] sm:$0xff]
  %v57 = vld [vmem:[%s2 + $0xb0] sm:$0xff]
  %v58 = vld [vmem:[%s2 + $0xb8] sm:$0xff]
  %v59 = vld [vmem:[%s4] sm:$0x1]
  %v61 = vlaneseq
  %v62 = vshrl.u32 %v61, 7
  %v63 = vsub.s32 0, %v62
  %v64 = vrot.slane %v59, %v63
  %vm66 = vcmask 523264
  %v68 = vsel %vm66, %v33, 0
  %70 = vmatprep.subr.mxu0 0.0
  %71 = vmatpush1.msra.mxu0 %v50
  %72 = vmatprep.subr.mxu0 0.0
  %73 = vmatpush1.msra.mxu0 %v49
  %74 = vmatprep.subr.mxu0 0.0
  %75 = vmatpush1.msra.mxu0 %v48
  %76 = vmatprep.subr.mxu0 0.0
  %77 = vmatpush1.msra.mxu0 %v47
  %78 = vmatprep.subr.mxu0 0.0
  %79 = vmatpush1.msra.mxu0 %v46
  %80 = vmatprep.subr.mxu0 0.0
  %81 = vmatpush1.msra.mxu0 %v45
  %82 = vmatprep.subr.mxu0 0.0
  %83 = vmatpush1.msra.mxu0 %v44
  %84 = vmatprep.subr.mxu0 0.0
  %85 = vmatpush1.msra.mxu0 %v43
  %86 = vmatprep.subr.mxu0 0.0
  %87 = vmatpush1.msra.mxu0 %v42
  %88 = vmatprep.subr.mxu0 0.0
  %89 = vmatpush1.msra.mxu0 %v41
  %90 = vmatprep.subr.mxu0 0.0
  %91 = vmatpush1.msra.mxu0 %v40
  %92 = vmatprep.subr.mxu0 0.0
  %93 = vmatpush1.msra.mxu0 %v39
  %94 = vmatprep.subr.mxu0 0.0
  %95 = vmatpush1.msra.mxu0 %v38
  %96 = vmatprep.subr.mxu0 0.0
  %97 = vmatpush1.msra.mxu0 %v37
  %98 = vmatprep.subr.mxu0 0.0
  %99 = vmatpush1.msra.mxu0 %v36
  %100 = vmatprep.subr.mxu0 0.0
  %101 = vmatpush1.msra.mxu0 %v35
  %102 = vmatprep.subr.mxu0 0.0
  %103 = vmatpush2.msra.mxu0 0.0
  %104 = vmatprep.subr.mxu0 0.0
  %105 = vmatpush2.msra.mxu0 0.0
  %106 = vmatprep.subr.mxu0 0.0
  %107 = vmatpush2.msra.mxu0 0.0
  %108 = vmatprep.subr.mxu0 0.0
  %109 = vmatpush2.msra.mxu0 0.0
  %110 = vmatprep.subr.mxu0 0.0
  %111 = vmatpush2.msra.mxu0 0.0
  %112 = vmatprep.subr.mxu0 0.0
  %113 = vmatpush2.msra.mxu0 0.0
  %114 = vmatprep.subr.mxu0 0.0
  %115 = vmatpush2.msra.mxu0 0.0
  %116 = vmatprep.subr.mxu0 0.0
  %117 = vmatpush2.msra.mxu0 0.0
  %118 = vmatprep.subr.mxu0 0.0
  %119 = vmatpush2.msra.mxu0 %v58
  %120 = vmatprep.subr.mxu0 0.0
  %121 = vmatpush2.msra.mxu0 %v57
  %122 = vmatprep.subr.mxu0 0.0
  %123 = vmatpush2.msra.mxu0 %v56
  %124 = vmatprep.subr.mxu0 0.0
  %125 = vmatpush2.msra.mxu0 %v55
  %126 = vmatprep.subr.mxu0 0.0
  %127 = vmatpush2.msra.mxu0 %v54
  %128 = vmatprep.subr.mxu0 0.0
  %129 = vmatpush2.msra.mxu0 %v53
  %130 = vmatprep.subr.mxu0 0.0
  %131 = vmatpush2.msra.mxu0 %v52
  %132 = vmatprep.subr.mxu0 0.0
  %133 = vmatpush2.msra.mxu0 %v51
  %134 = vmatprep.mubr.f32.mxu0 %v68
  %135 = vmatmul.mubr.f32.gmra.mxu0 %v32
  %v136 = vpop.f32.mrf.mxu0
  %v137 = vadd.f32 %v64, %v136
  %v138 = vpop.f32.mrf.mxu0
  %139 = vdwg.mxu0
  %v140 = vld [vmem:[%s3] sm:$0xff]
  %v141 = vld [vmem:[%s3 + $0x8] sm:$0xff]
  %v142 = vld [vmem:[%s3 + $0x10] sm:$0xff]
  %v143 = vld [vmem:[%s3 + $0x18] sm:$0xff]
  %vm144 = vcmask 261120
  %v146 = vsel %vm144, %v34, 0
  %148 = vmatprep.subr.mxu0 0.0
  %149 = vmatpush1.msra.mxu0 0.0
  %150 = vmatprep.subr.mxu0 0.0
  %151 = vmatpush1.msra.mxu0 0.0
  %152 = vmatprep.subr.mxu0 0.0
  %153 = vmatpush1.msra.mxu0 0.0
  %154 = vmatprep.subr.mxu0 0.0
  %155 = vmatpush1.msra.mxu0 0.0
  %156 = vmatprep.subr.mxu0 0.0
  %157 = vmatpush1.msra.mxu0 0.0
  %158 = vmatprep.subr.mxu0 0.0
  %159 = vmatpush1.msra.mxu0 0.0
  %160 = vmatprep.subr.mxu0 0.0
  %161 = vmatpush1.msra.mxu0 0.0
  %162 = vmatprep.subr.mxu0 0.0
  %163 = vmatpush1.msra.mxu0 0.0
  %164 = vmatprep.subr.mxu0 0.0
  %165 = vmatpush1.msra.mxu0 0.0
  %166 = vmatprep.subr.mxu0 0.0
  %167 = vmatpush1.msra.mxu0 0.0
  %168 = vmatprep.subr.mxu0 0.0
  %169 = vmatpush1.msra.mxu0 0.0
  %170 = vmatprep.subr.mxu0 0.0
  %171 = vmatpush1.msra.mxu0 0.0
  %172 = vmatprep.subr.mxu0 0.0
  %173 = vmatpush1.msra.mxu0 %v143
  %174 = vmatprep.subr.mxu0 0.0
  %175 = vmatpush1.msra.mxu0 %v142
  %176 = vmatprep.subr.mxu0 0.0
  %177 = vmatpush1.msra.mxu0 %v141
  %178 = vmatprep.subr.mxu0 0.0
  %179 = vmatpush1.msra.mxu0 %v140
  %180 = vmatprep.subr.mxu0 0.0
  %181 = vmatpush2.msra.mxu0 0.0
  %182 = vmatprep.subr.mxu0 0.0
  %183 = vmatpush2.msra.mxu0 0.0
  %184 = vmatprep.subr.mxu0 0.0
  %185 = vmatpush2.msra.mxu0 0.0
  %186 = vmatprep.subr.mxu0 0.0
  %187 = vmatpush2.msra.mxu0 0.0
  %188 = vmatprep.subr.mxu0 0.0
  %189 = vmatpush2.msra.mxu0 0.0
  %190 = vmatprep.subr.mxu0 0.0
  %191 = vmatpush2.msra.mxu0 0.0
  %192 = vmatprep.subr.mxu0 0.0
  %193 = vmatpush2.msra.mxu0 0.0
  %194 = vmatprep.subr.mxu0 0.0
  %195 = vmatpush2.msra.mxu0 0.0
  %196 = vmatprep.subr.mxu0 0.0
  %197 = vmatpush2.msra.mxu0 0.0
  %198 = vmatprep.subr.mxu0 0.0
  %199 = vmatpush2.msra.mxu0 0.0
  %200 = vmatprep.subr.mxu0 0.0
  %201 = vmatpush2.msra.mxu0 0.0
  %202 = vmatprep.subr.mxu0 0.0
  %203 = vmatpush2.msra.mxu0 0.0
  %204 = vmatprep.subr.mxu0 0.0
  %205 = vmatpush2.msra.mxu0 0.0
  %206 = vmatprep.subr.mxu0 0.0
  %207 = vmatpush2.msra.mxu0 0.0
  %208 = vmatprep.subr.mxu0 0.0
  %209 = vmatpush2.msra.mxu0 0.0
  %210 = vmatprep.subr.mxu0 0.0
  %211 = vmatpush2.msra.mxu0 0.0
  %212 = vmatprep.mubr.f32.mxu0 0.0
  %213 = vmatmul.mubr.f32.gmra.mxu0 %v146
  %v214 = vpop.f32.mrf.mxu0
  %v215 = vadd.f32 %v137, %v214
  %v216 = vpop.f32.mrf.mxu0
  %217 = vdwg.mxu0
  %v218 = vmax.f32 %v215, 0.0
  %v219 = vld [vmem:[%s5] sm:$0xff]
  %v220 = vld [vmem:[%s5 + $0x8] sm:$0xff]
  %v221 = vld [vmem:[%s5 + $0x10] sm:$0xff]
  %v222 = vld [vmem:[%s5 + $0x18] sm:$0xff]
  %v223 = vld [vmem:[%s5 + $0x20] sm:$0xff]
  %v224 = vld [vmem:[%s5 + $0x28] sm:$0xff]
  %v225 = vld [vmem:[%s5 + $0x30] sm:$0xff]
  %v226 = vld [vmem:[%s5 + $0x38] sm:$0xff]
  %v227 = vld [vmem:[%s6] sm:$0x1]
  %v229 = vlaneseq
  %v230 = vshrl.u32 %v229, 7
  %v231 = vsub.s32 0, %v230
  %v232 = vrot.slane %v227, %v231
  %v235 = vsel %vm66, %v218, 0
  %237 = vmatprep.subr.mxu0 0.0
  %238 = vmatpush1.msra.mxu0 0.0
  %239 = vmatprep.subr.mxu0 0.0
  %240 = vmatpush1.msra.mxu0 0.0
  %241 = vmatprep.subr.mxu0 0.0
  %242 = vmatpush1.msra.mxu0 0.0
  %243 = vmatprep.subr.mxu0 0.0
  %244 = vmatpush1.msra.mxu0 0.0
  %245 = vmatprep.subr.mxu0 0.0
  %246 = vmatpush1.msra.mxu0 0.0
  %247 = vmatprep.subr.mxu0 0.0
  %248 = vmatpush1.msra.mxu0 0.0
  %249 = vmatprep.subr.mxu0 0.0
  %250 = vmatpush1.msra.mxu0 0.0
  %251 = vmatprep.subr.mxu0 0.0
  %252 = vmatpush1.msra.mxu0 0.0
  %253 = vmatprep.subr.mxu0 0.0
  %254 = vmatpush1.msra.mxu0 %v226
  %255 = vmatprep.subr.mxu0 0.0
  %256 = vmatpush1.msra.mxu0 %v225
  %257 = vmatprep.subr.mxu0 0.0
  %258 = vmatpush1.msra.mxu0 %v224
  %259 = vmatprep.subr.mxu0 0.0
  %260 = vmatpush1.msra.mxu0 %v223
  %261 = vmatprep.subr.mxu0 0.0
  %262 = vmatpush1.msra.mxu0 %v222
  %263 = vmatprep.subr.mxu0 0.0
  %264 = vmatpush1.msra.mxu0 %v221
  %265 = vmatprep.subr.mxu0 0.0
  %266 = vmatpush1.msra.mxu0 %v220
  %267 = vmatprep.subr.mxu0 0.0
  %268 = vmatpush1.msra.mxu0 %v219
  %269 = vmatprep.subr.mxu0 0.0
  %270 = vmatpush2.msra.mxu0 0.0
  %271 = vmatprep.subr.mxu0 0.0
  %272 = vmatpush2.msra.mxu0 0.0
  %273 = vmatprep.subr.mxu0 0.0
  %274 = vmatpush2.msra.mxu0 0.0
  %275 = vmatprep.subr.mxu0 0.0
  %276 = vmatpush2.msra.mxu0 0.0
  %277 = vmatprep.subr.mxu0 0.0
  %278 = vmatpush2.msra.mxu0 0.0
  %279 = vmatprep.subr.mxu0 0.0
  %280 = vmatpush2.msra.mxu0 0.0
  %281 = vmatprep.subr.mxu0 0.0
  %282 = vmatpush2.msra.mxu0 0.0
  %283 = vmatprep.subr.mxu0 0.0
  %284 = vmatpush2.msra.mxu0 0.0
  %285 = vmatprep.subr.mxu0 0.0
  %286 = vmatpush2.msra.mxu0 0.0
  %287 = vmatprep.subr.mxu0 0.0
  %288 = vmatpush2.msra.mxu0 0.0
  %289 = vmatprep.subr.mxu0 0.0
  %290 = vmatpush2.msra.mxu0 0.0
  %291 = vmatprep.subr.mxu0 0.0
  %292 = vmatpush2.msra.mxu0 0.0
  %293 = vmatprep.subr.mxu0 0.0
  %294 = vmatpush2.msra.mxu0 0.0
  %295 = vmatprep.subr.mxu0 0.0
  %296 = vmatpush2.msra.mxu0 0.0
  %297 = vmatprep.subr.mxu0 0.0
  %298 = vmatpush2.msra.mxu0 0.0
  %299 = vmatprep.subr.mxu0 0.0
  %300 = vmatpush2.msra.mxu0 0.0
  %301 = vmatprep.mubr.f32.mxu0 0.0
  %302 = vmatmul.mubr.f32.gmra.mxu0 %v235
  %v303 = vpop.f32.mrf.mxu0
  %v304 = vadd.f32 %v232, %v303
  %v305 = vpop.f32.mrf.mxu0
  %306 = vdwg.mxu0
  %v307 = vmax.f32 %v304, 0.0
  %v308 = vld [vmem:[%s7] sm:$0xff]
  %v309 = vld [vmem:[%s7 + $0x8] sm:$0xff]
  %v310 = vld [vmem:[%s7 + $0x10] sm:$0xff]
  %v311 = vld [vmem:[%s7 + $0x18] sm:$0xff]
  %v312 = vld [vmem:[%s8] sm:$0x1]
  %v314 = vlaneseq
  %v315 = vshrl.u32 %v314, 7
  %v316 = vsub.s32 0, %v315
  %v317 = vrot.slane %v312, %v316
  %v320 = vsel %vm144, %v307, 0
  %322 = vmatprep.subr.mxu0 0.0
  %323 = vmatpush1.msra.mxu0 0.0
  %324 = vmatprep.subr.mxu0 0.0
  %325 = vmatpush1.msra.mxu0 0.0
  %326 = vmatprep.subr.mxu0 0.0
  %327 = vmatpush1.msra.mxu0 0.0
  %328 = vmatprep.subr.mxu0 0.0
  %329 = vmatpush1.msra.mxu0 0.0
  %330 = vmatprep.subr.mxu0 0.0
  %331 = vmatpush1.msra.mxu0 0.0
  %332 = vmatprep.subr.mxu0 0.0
  %333 = vmatpush1.msra.mxu0 0.0
  %334 = vmatprep.subr.mxu0 0.0
  %335 = vmatpush1.msra.mxu0 0.0
  %336 = vmatprep.subr.mxu0 0.0
  %337 = vmatpush1.msra.mxu0 0.0
  %338 = vmatprep.subr.mxu0 0.0
  %339 = vmatpush1.msra.mxu0 0.0
  %340 = vmatprep.subr.mxu0 0.0
  %341 = vmatpush1.msra.mxu0 0.0
  %342 = vmatprep.subr.mxu0 0.0
  %343 = vmatpush1.msra.mxu0 0.0
  %344 = vmatprep.subr.mxu0 0.0
  %345 = vmatpush1.msra.mxu0 0.0
  %346 = vmatprep.subr.mxu0 0.0
  %347 = vmatpush1.msra.mxu0 %v311
  %348 = vmatprep.subr.mxu0 0.0
  %349 = vmatpush1.msra.mxu0 %v310
  %350 = vmatprep.subr.mxu0 0.0
  %351 = vmatpush1.msra.mxu0 %v309
  %352 = vmatprep.subr.mxu0 0.0
  %353 = vmatpush1.msra.mxu0 %v308
  %354 = vmatprep.subr.mxu0 0.0
  %355 = vmatpush2.msra.mxu0 0.0
  %356 = vmatprep.subr.mxu0 0.0
  %357 = vmatpush2.msra.mxu0 0.0
  %358 = vmatprep.subr.mxu0 0.0
  %359 = vmatpush2.msra.mxu0 0.0
  %360 = vmatprep.subr.mxu0 0.0
  %361 = vmatpush2.msra.mxu0 0.0
  %362 = vmatprep.subr.mxu0 0.0
  %363 = vmatpush2.msra.mxu0 0.0
  %364 = vmatprep.subr.mxu0 0.0
  %365 = vmatpush2.msra.mxu0 0.0
  %366 = vmatprep.subr.mxu0 0.0
  %367 = vmatpush2.msra.mxu0 0.0
  %368 = vmatprep.subr.mxu0 0.0
  %369 = vmatpush2.msra.mxu0 0.0
  %370 = vmatprep.subr.mxu0 0.0
  %371 = vmatpush2.msra.mxu0 0.0
  %372 = vmatprep.subr.mxu0 0.0
  %373 = vmatpush2.msra.mxu0 0.0
  %374 = vmatprep.subr.mxu0 0.0
  %375 = vmatpush2.msra.mxu0 0.0
  %376 = vmatprep.subr.mxu0 0.0
  %377 = vmatpush2.msra.mxu0 0.0
  %378 = vmatprep.subr.mxu0 0.0
  %379 = vmatpush2.msra.mxu0 0.0
  %380 = vmatprep.subr.mxu0 0.0
  %381 = vmatpush2.msra.mxu0 0.0
  %382 = vmatprep.subr.mxu0 0.0
  %383 = vmatpush2.msra.mxu0 0.0
  %384 = vmatprep.subr.mxu0 0.0
  %385 = vmatpush2.msra.mxu0 0.0
  %386 = vmatprep.mubr.f32.mxu0 0.0
  %387 = vmatmul.mubr.f32.gmra.mxu0 %v320
  %v388 = vpop.f32.mrf.mxu0
  %v389 = vadd.f32 %v317, %v388
  %v390 = vpop.f32.mrf.mxu0
  %391 = vdwg.mxu0
  %vm392 = vcmask 15360
  %393 = vst.msk [vmem:[%s9] sm:$0xff] %vm392, %v389
  // Predicated region
  $region38: #{tpu_custom_call.1} parent=0 // pred_check
    _
  $region39: #{tpu_custom_call.1} parent=0 // pred_check_branch
    %395 = sbr.rel (0) target = $region41
  $region40: #{tpu_custom_call.1} parent=0 // pred_region
    _
  $region41: #{tpu_custom_call.1} parent=0 // pred_fallthru
    _
  // Predicated region
  $region42: #{tpu_custom_call.1} parent=0 // pred_check
    _
  $region43: #{tpu_custom_call.1} parent=0 // pred_check_branch
    %397 = sbr.rel (0) target = $region45
  $region44: #{tpu_custom_call.1} parent=0 // pred_region
    _
  $region45: #{tpu_custom_call.1} parent=0 // pred_fallthru
    _

</llo_original>
